<compile_context>
chip_gen: v5e
topology: v5e:2x2
jax: 0.10.0
libtpu: 0.0.40
codegen_flags: <defaults>
</compile_context>

<pallas_src>
import jax
import jax.numpy as jnp
from jax import lax
from jax.experimental import pallas as pl
from jax.experimental.pallas import tpu as pltpu

_LANE = 128
_SUBLANE = 8


def _ngram_kernel(tok_ref, t1_ref, b1_ref, w2_ref, b2_ref, o_ref):
    """One batch tile of the NGram forward pass.

    tok_ref : (TB, G)   int32  token ids for this tile
    t1_ref  : (G, V, H) f32    folded table  T[g] = embedding @ W1_g
    b1_ref  : (1, H)    f32
    w2_ref  : (H, VP)   f32    vocab padded to a lane multiple
    b2_ref  : (1, VP)   f32    padded columns hold -1e30
    o_ref   : (TB, VP)  f32    log-probs (lane-dense store)
    """
    tb, g_n = tok_ref.shape
    _, v, _ = t1_ref.shape

    tok = tok_ref[...]                                        # (TB, G) int32
    iota_v = lax.broadcasted_iota(jnp.int32, (tb, v), 1)      # (TB, V)

    # Layer 1 (embedding gather fused + folded into the weight table):
    #   x @ W1 + b1  ==  b1 + sum_g onehot(tok[:, g]) @ (embedding @ W1_g)
    h = b1_ref[...]                                           # (1, H), broadcasts
    for g in range(g_n):                                      # G is small & static
        onehot = (tok[:, g:g + 1] == iota_v).astype(jnp.float32)   # (TB, V)
        h = h + jnp.dot(onehot, t1_ref[g],
                        preferred_element_type=jnp.float32)
    h = jnp.maximum(h, 0.0)                                   # ReLU

    # Layer 2 + numerically-stable log-softmax over the (padded) vocab axis.
    z = jnp.dot(h, w2_ref[...], preferred_element_type=jnp.float32) + b2_ref[...]
    m = jnp.max(z, axis=-1, keepdims=True)
    shifted = z - m
    lse = jnp.log(jnp.sum(jnp.exp(shifted), axis=-1, keepdims=True))
    o_ref[...] = (shifted - lse).astype(o_ref.dtype)


def ngram_forward(tokens, embedding, w1, b1, w2, b2, *, batch_tile=128):
    """Batched NGram forward pass.

    tokens    : (B, G) int     context token ids
    embedding : (V, E) f32
    w1        : (G*E, H) f32   (= PyTorch linear1.weight.T)
    b1        : (H,) or (1, H)
    w2        : (H, V) f32     (= PyTorch linear2.weight.T)
    b2        : (V,) or (1, V)
    returns   : (B, V) f32 log-probs
    """
    B, G = tokens.shape
    V, E = embedding.shape
    H = w1.shape[1]
    assert w1.shape[0] == G * E and w2.shape == (H, V)
    f32 = jnp.float32

    # Fold embedding into linear1:  T[g] = embedding @ W1[g*E:(g+1)*E, :].
    t1 = jnp.einsum("ve,geh->gvh", embedding.astype(f32),
                    w1.astype(f32).reshape(G, E, H))          # (G, V, H)
    b1 = jnp.asarray(b1, f32).reshape(1, H)

    # Lane-dense output: pad vocab to a multiple of 128; padded logits get a
    # large negative bias so they vanish under log-softmax.
    vp = ((V + _LANE - 1) // _LANE) * _LANE
    w2p = jnp.zeros((H, vp), f32).at[:, :V].set(w2.astype(f32))
    b2p = jnp.full((1, vp), -1e30, f32).at[:, :V].set(
        jnp.asarray(b2, f32).reshape(-1))

    # Pad batch to the tile size (min 8 rows = one f32 sublane group).
    tb = min(batch_tile, ((B + _SUBLANE - 1) // _SUBLANE) * _SUBLANE)
    bp = ((B + tb - 1) // tb) * tb
    tok_p = jnp.zeros((bp, G), jnp.int32).at[:B].set(tokens.astype(jnp.int32))

    out = pl.pallas_call(
        _ngram_kernel,
        out_shape=jax.ShapeDtypeStruct((bp, vp), f32),
        grid_spec=pltpu.PrefetchScalarGridSpec(
            num_scalar_prefetch=0,
            grid=(bp // tb,),
            in_specs=[
                pl.BlockSpec((tb, G), lambda i: (i, 0)),        # tokens: tiled
                pl.BlockSpec((G, V, H), lambda i: (0, 0, 0)),   # weights: resident
                pl.BlockSpec((1, H), lambda i: (0, 0)),
                pl.BlockSpec((H, vp), lambda i: (0, 0)),
                pl.BlockSpec((1, vp), lambda i: (0, 0)),
            ],
            out_specs=pl.BlockSpec((tb, vp), lambda i: (i, 0)),
        ),
        compiler_params=pltpu.CompilerParams(
            dimension_semantics=("parallel",)),  # shard batch over v7x's 2 TCs
    )(tok_p, t1, b1, w2p, b2p)
    return out[:B, :V]


def _reference(tokens, embedding, w1, b1, w2, b2):
    x = jnp.take(embedding, tokens, axis=0).reshape(tokens.shape[0], -1)
    h = jnp.maximum(x @ w1 + jnp.reshape(b1, (1, -1)), 0.0)
    z = h @ w2 + jnp.reshape(b2, (1, -1))
    return jax.nn.log_softmax(z, axis=-1)


if __name__ == "__main__":
    # Small, deterministic configuration (batched).
    voc_size, embedding_dim, hidden_size, gram_size = 32, 16, 32, 4
    batch = 256

    key = jax.random.PRNGKey(0)
    k_emb, k_w1, k_b1, k_w2, k_b2, k_tok = jax.random.split(key, 6)

    embedding = jax.random.normal(k_emb, (voc_size, embedding_dim), jnp.float32)
    # Linear weights stored as (in_features, out_features)  (= PyTorch W.T)
    in1 = gram_size * embedding_dim
    w1 = jax.random.normal(k_w1, (in1, hidden_size), jnp.float32) / jnp.sqrt(in1)
    b1 = jax.random.normal(k_b1, (1, hidden_size), jnp.float32) * 0.01
    w2 = jax.random.normal(k_w2, (hidden_size, voc_size), jnp.float32) / jnp.sqrt(hidden_size)
    b2 = jax.random.normal(k_b2, (1, voc_size), jnp.float32) * 0.01

    tokens = jax.random.randint(k_tok, (batch, gram_size), 0, voc_size, jnp.int32)

    # Batched path (the performance path).
    out = jax.block_until_ready(ngram_forward(tokens, embedding, w1, b1, w2, b2))
    ref = _reference(tokens, embedding, w1, b1, w2, b2)
    assert out.shape == (batch, voc_size)
    err = float(jnp.max(jnp.abs(out - ref)))
    assert jnp.allclose(out, ref, atol=1e-4, rtol=1e-4), f"mismatch vs reference (max err {err})"

    # Original module semantics: a single G-token context -> (1, V) log-probs.
    single = jax.block_until_ready(ngram_forward(tokens[:1], embedding, w1, b1, w2, b2))
    ref1 = _reference(tokens[:1], embedding, w1, b1, w2, b2)
    assert single.shape == (1, voc_size)
    assert jnp.allclose(single, ref1, atol=1e-4, rtol=1e-4), "single-context mismatch"

    print("KERNEL_OK")
</pallas_src>

<mosaic_0001>
module attributes {stable_mosaic.version = 11 : i64} {
  func.func @_ngram_kernel(%arg0: i32, %arg1: memref<128x4xi32, #tpu.memory_space<vmem>>, %arg2: memref<4x32x32xf32, #tpu.memory_space<vmem>>, %arg3: memref<1x32xf32, #tpu.memory_space<vmem>>, %arg4: memref<32x128xf32, #tpu.memory_space<vmem>>, %arg5: memref<1x128xf32, #tpu.memory_space<vmem>>, %arg6: memref<128x128xf32, #tpu.memory_space<vmem>>) attributes {dimension_semantics = [#tpu.dimension_semantics<parallel>], iteration_bounds = array<i64: 2>, scalar_prefetch = 0 : i64, scratch_operands = 0 : i64, tpu.core_type = #tpu.core_type<tc>, window_params = [{transform_indices = @transform_0, window_bounds = array<i64: 128, 4>}, {pipeline_mode = #tpu.pipeline_mode<synchronous>, transform_indices = @transform_1, window_bounds = array<i64: 4, 32, 32>}, {pipeline_mode = #tpu.pipeline_mode<synchronous>, transform_indices = @transform_2, window_bounds = array<i64: 1, 32>}, {pipeline_mode = #tpu.pipeline_mode<synchronous>, transform_indices = @transform_3, window_bounds = array<i64: 32, 128>}, {pipeline_mode = #tpu.pipeline_mode<synchronous>, transform_indices = @transform_4, window_bounds = array<i64: 1, 128>}, {transform_indices = @transform_5, window_bounds = array<i64: 128, 128>}]} {
    %c0 = arith.constant 0 : index
    %c0_0 = arith.constant 0 : index
    %0 = vector.load %arg1[%c0, %c0_0] : memref<128x4xi32, #tpu.memory_space<vmem>>, vector<128x4xi32>
    %1 = tpu.iota {dimensions = array<i32: 1>} : vector<128x32xi32>
    %c0_1 = arith.constant 0 : index
    %c0_2 = arith.constant 0 : index
    %2 = vector.load %arg3[%c0_1, %c0_2] : memref<1x32xf32, #tpu.memory_space<vmem>>, vector<1x32xf32>
    %3 = vector.extract_strided_slice %0 {offsets = [0, 0], sizes = [128, 1], strides = [1, 1]} : vector<128x4xi32> to vector<128x1xi32>
    %4 = vector.broadcast %3 : vector<128x1xi32> to vector<128x32xi32>
    %5 = arith.cmpi eq, %4, %1 : vector<128x32xi32>
    %6 = arith.extui %5 : vector<128x32xi1> to vector<128x32xi32>
    %7 = arith.sitofp %6 : vector<128x32xi32> to vector<128x32xf32>
    %c0_3 = arith.constant 0 : index
    %c0_4 = arith.constant 0 : index
    %c0_5 = arith.constant 0 : index
    %8 = vector.load %arg2[%c0_3, %c0_4, %c0_5] : memref<4x32x32xf32, #tpu.memory_space<vmem>>, vector<1x32x32xf32>
    %9 = vector.shape_cast %8 : vector<1x32x32xf32> to vector<32x32xf32>
    %cst = arith.constant dense<0.000000e+00> : vector<128x32xf32>
    %10 = tpu.matmul %7, %9, %cst {dimension_numbers = #tpu.dot_dimension_numbers<[1], [0], [0], [1], [0, 0, 1, 1], [], []>} : vector<128x32xf32>, vector<32x32xf32>, vector<128x32xf32> -> vector<128x32xf32>
    %11 = vector.broadcast %2 : vector<1x32xf32> to vector<128x32xf32>
    %12 = arith.addf %11, %10 : vector<128x32xf32>
    %13 = vector.extract_strided_slice %0 {offsets = [0, 1], sizes = [128, 1], strides = [1, 1]} : vector<128x4xi32> to vector<128x1xi32>
    %14 = vector.broadcast %13 : vector<128x1xi32> to vector<128x32xi32>
    %15 = arith.cmpi eq, %14, %1 : vector<128x32xi32>
    %16 = arith.extui %15 : vector<128x32xi1> to vector<128x32xi32>
    %17 = arith.sitofp %16 : vector<128x32xi32> to vector<128x32xf32>
    %c1 = arith.constant 1 : index
    %c0_6 = arith.constant 0 : index
    %c0_7 = arith.constant 0 : index
    %18 = vector.load %arg2[%c1, %c0_6, %c0_7] : memref<4x32x32xf32, #tpu.memory_space<vmem>>, vector<1x32x32xf32>
    %19 = vector.shape_cast %18 : vector<1x32x32xf32> to vector<32x32xf32>
    %cst_8 = arith.constant dense<0.000000e+00> : vector<128x32xf32>
    %20 = tpu.matmul %17, %19, %cst_8 {dimension_numbers = #tpu.dot_dimension_numbers<[1], [0], [0], [1], [0, 0, 1, 1], [], []>} : vector<128x32xf32>, vector<32x32xf32>, vector<128x32xf32> -> vector<128x32xf32>
    %21 = arith.addf %12, %20 : vector<128x32xf32>
    %22 = vector.extract_strided_slice %0 {offsets = [0, 2], sizes = [128, 1], strides = [1, 1]} : vector<128x4xi32> to vector<128x1xi32>
    %23 = vector.broadcast %22 : vector<128x1xi32> to vector<128x32xi32>
    %24 = arith.cmpi eq, %23, %1 : vector<128x32xi32>
    %25 = arith.extui %24 : vector<128x32xi1> to vector<128x32xi32>
    %26 = arith.sitofp %25 : vector<128x32xi32> to vector<128x32xf32>
    %c2 = arith.constant 2 : index
    %c0_9 = arith.constant 0 : index
    %c0_10 = arith.constant 0 : index
    %27 = vector.load %arg2[%c2, %c0_9, %c0_10] : memref<4x32x32xf32, #tpu.memory_space<vmem>>, vector<1x32x32xf32>
    %28 = vector.shape_cast %27 : vector<1x32x32xf32> to vector<32x32xf32>
    %cst_11 = arith.constant dense<0.000000e+00> : vector<128x32xf32>
    %29 = tpu.matmul %26, %28, %cst_11 {dimension_numbers = #tpu.dot_dimension_numbers<[1], [0], [0], [1], [0, 0, 1, 1], [], []>} : vector<128x32xf32>, vector<32x32xf32>, vector<128x32xf32> -> vector<128x32xf32>
    %30 = arith.addf %21, %29 : vector<128x32xf32>
    %31 = vector.extract_strided_slice %0 {offsets = [0, 3], sizes = [128, 1], strides = [1, 1]} : vector<128x4xi32> to vector<128x1xi32>
    %32 = vector.broadcast %31 : vector<128x1xi32> to vector<128x32xi32>
    %33 = arith.cmpi eq, %32, %1 : vector<128x32xi32>
    %34 = arith.extui %33 : vector<128x32xi1> to vector<128x32xi32>
    %35 = arith.sitofp %34 : vector<128x32xi32> to vector<128x32xf32>
    %c3 = arith.constant 3 : index
    %c0_12 = arith.constant 0 : index
    %c0_13 = arith.constant 0 : index
    %36 = vector.load %arg2[%c3, %c0_12, %c0_13] : memref<4x32x32xf32, #tpu.memory_space<vmem>>, vector<1x32x32xf32>
    %37 = vector.shape_cast %36 : vector<1x32x32xf32> to vector<32x32xf32>
    %cst_14 = arith.constant dense<0.000000e+00> : vector<128x32xf32>
    %38 = tpu.matmul %35, %37, %cst_14 {dimension_numbers = #tpu.dot_dimension_numbers<[1], [0], [0], [1], [0, 0, 1, 1], [], []>} : vector<128x32xf32>, vector<32x32xf32>, vector<128x32xf32> -> vector<128x32xf32>
    %39 = arith.addf %30, %38 : vector<128x32xf32>
    %cst_15 = arith.constant 0.000000e+00 : f32
    %40 = vector.broadcast %cst_15 : f32 to vector<128x32xf32>
    %41 = arith.maximumf %39, %40 : vector<128x32xf32>
    %c0_16 = arith.constant 0 : index
    %c0_17 = arith.constant 0 : index
    %42 = vector.load %arg4[%c0_16, %c0_17] : memref<32x128xf32, #tpu.memory_space<vmem>>, vector<32x128xf32>
    %cst_18 = arith.constant dense<0.000000e+00> : vector<128x128xf32>
    %43 = tpu.matmul %41, %42, %cst_18 {dimension_numbers = #tpu.dot_dimension_numbers<[1], [0], [0], [1], [0, 0, 1, 1], [], []>} : vector<128x32xf32>, vector<32x128xf32>, vector<128x128xf32> -> vector<128x128xf32>
    %c0_19 = arith.constant 0 : index
    %c0_20 = arith.constant 0 : index
    %44 = vector.load %arg5[%c0_19, %c0_20] : memref<1x128xf32, #tpu.memory_space<vmem>>, vector<1x128xf32>
    %45 = vector.broadcast %44 : vector<1x128xf32> to vector<128x128xf32>
    %46 = arith.addf %43, %45 : vector<128x128xf32>
    %cst_21 = arith.constant dense<0xFF800000> : vector<128xf32>
    %47 = vector.multi_reduction <maximumf>, %46, %cst_21 [1] : vector<128x128xf32> to vector<128xf32>
    %48 = vector.shape_cast %47 : vector<128xf32> to vector<128x1xf32>
    %49 = vector.broadcast %48 : vector<128x1xf32> to vector<128x128xf32>
    %50 = arith.subf %46, %49 : vector<128x128xf32>
    %51 = math.exp %50 : vector<128x128xf32>
    %cst_22 = arith.constant dense<0.000000e+00> : vector<128xf32>
    %52 = vector.multi_reduction <add>, %51, %cst_22 [1] : vector<128x128xf32> to vector<128xf32>
    %53 = vector.shape_cast %52 : vector<128xf32> to vector<128x1xf32>
    %54 = math.log %53 : vector<128x1xf32>
    %55 = vector.broadcast %54 : vector<128x1xf32> to vector<128x128xf32>
    %56 = arith.subf %50, %55 : vector<128x128xf32>
    %c0_23 = arith.constant 0 : index
    %c0_24 = arith.constant 0 : index
    %57 = vector.load %arg6[%c0_23, %c0_24] : memref<128x128xf32, #tpu.memory_space<vmem>>, vector<128x128xf32>
    tpu.vector_store %arg6[%c0_23, %c0_24], %56 {strides = array<i32>} : memref<128x128xf32, #tpu.memory_space<vmem>>, vector<128x128xf32>,
    return
  }
  func.func @transform_0(%arg0: i32) -> (i32, i32) {
    %c0_i32 = arith.constant 0 : i32
    %c0_i32_0 = arith.constant 0 : i32
    return %arg0, %c0_i32 : i32, i32
  }
  func.func @transform_1(%arg0: i32) -> (i32, i32, i32) {
    %c0_i32 = arith.constant 0 : i32
    %c0_i32_0 = arith.constant 0 : i32
    %c0_i32_1 = arith.constant 0 : i32
    %c0_i32_2 = arith.constant 0 : i32
    return %c0_i32, %c0_i32_0, %c0_i32_1 : i32, i32, i32
  }
  func.func @transform_2(%arg0: i32) -> (i32, i32) {
    %c0_i32 = arith.constant 0 : i32
    %c0_i32_0 = arith.constant 0 : i32
    %c0_i32_1 = arith.constant 0 : i32
    return %c0_i32, %c0_i32_0 : i32, i32
  }
  func.func @transform_3(%arg0: i32) -> (i32, i32) {
    %c0_i32 = arith.constant 0 : i32
    %c0_i32_0 = arith.constant 0 : i32
    %c0_i32_1 = arith.constant 0 : i32
    return %c0_i32, %c0_i32_0 : i32, i32
  }
  func.func @transform_4(%arg0: i32) -> (i32, i32) {
    %c0_i32 = arith.constant 0 : i32
    %c0_i32_0 = arith.constant 0 : i32
    %c0_i32_1 = arith.constant 0 : i32
    return %c0_i32, %c0_i32_0 : i32, i32
  }
  func.func @transform_5(%arg0: i32) -> (i32, i32) {
    %c0_i32 = arith.constant 0 : i32
    %c0_i32_0 = arith.constant 0 : i32
    return %arg0, %c0_i32 : i32, i32
  }
}

</mosaic_0001>

<llo_original>
// kernel: tpu_custom_call.1
$region0: #{tpu_custom_call.1}
  #allocation0 [shape = 'u32[]', space=smem, size = 0x4, offset = 0x4, fixed_abs, tag = 'smem constant byte address 0x4 - core index']
  #allocation1 [shape = 'u32[72,128]{1,0:T(1,128)}', space=vmem, size = 0x9000, scoped, tag = 'internal scratch']
  %s0 = inlined_call_operand.vmem [shape: s32[256,4], index: 0, kind: input, shape index: {}]
  %s1 = inlined_call_operand.vmem [shape: f32[4,32,32], index: 1, kind: input, shape index: {}]
  %s2 = inlined_call_operand.vmem [shape: f32[1,32], index: 2, kind: input, shape index: {}]
  %s3 = inlined_call_operand.vmem [shape: f32[32,128], index: 3, kind: input, shape index: {}]
  %s4 = inlined_call_operand.vmem [shape: f32[1,128], index: 4, kind: input, shape index: {}]
  %s5 = inlined_call_operand.hbm [shape: f32[256,128], index: 5, kind: output, shape index: {}]
  %s6 = sld [smem:[#allocation0]]
  $region53: #{tpu_custom_call.1} parent=0
    _
  %s8 = ssub.s32 1, %s6
  %s9 = scalar_select 0, %s8, %s6
  $region1: #{tpu_custom_call.1} parent=0
    #allocation2 [shape = 'u8[131072]{0}', space=vmem, size = 0x20000, scoped, tag = 'output window, operand 0']
    #allocation3 [shape = 's32[2]{0}', space=sflag, size = 0x8, scoped, tag = 'scoped memory for tpu_custom_call.1']
    %10 = vsyncpa [#allocation3], 0
    %s11 = scalar_lea.sflag [#allocation3], 1
    %12 = vsyncpa %s11, 0
    loop: start=0, step=1, limit=4
    $region2: #{tpu_custom_call.1} parent=1 // loop_pre_header
      _
    $region3: #{tpu_custom_call.1} parent=1 // loop_header
      %s14 = sphi 0, %s18
      %p15 = scmp.ge.s32.totalorder %s14, 4
      %s24 = sphi 0, %s26
      %s27 = sphi 0, %s24
      %s28 = sphi 0, %s27
      %s44 = sphi 0, %s28
      %s48 = sphi 0, %s48
      %s50 = sphi 0, %s48
      %s51 = sphi 0, %s50
      %s65 = sphi 0, %s51
      %s69 = sphi 0, %s69
      %s71 = sphi 0, %s69
      %s72 = sphi 0, %s71
      %s86 = sphi 0, %s72
      %s90 = sphi 0, %s90
      %s92 = sphi 0, %s90
      %s93 = sphi 0, %s92
      %s107 = sphi 0, %s93
      %s111 = sphi 0, %s111
      %s113 = sphi 0, %s111
      %s114 = sphi 0, %s113
      %s128 = sphi 0, %s114
      %s134 = sphi 0, %s136
      %s137 = sphi 0, %s134
      %s138 = sphi 0, %s137
      %s154 = sphi 0, %s138
    $region4: #{tpu_custom_call.1} parent=1 // loop_header_branch
      %17 = sbr.rel (%p15) target = $region8
    $region5: #{tpu_custom_call.1} parent=1 // loop_body
      %s19 = ssub.s32 %s14, 1
      %s20 = ssub.s32 %s14, 2
      %s21 = sadd.s32 %s14, 1
      %s22 = ssub.s32 %s14, %s21
      %p23 = scmp.eq.s32.totalorder %s22, 0
      %s25 = sadd.s32 %s24, 1
      %s26 = scalar_select %p23, %s24, %s25
      %p29 = pneg %p23
      %p30 = scmp.eq.s32.totalorder %s14, 1
      %p31 = por %p29, %p30
      %p32 = scmp.ne.s32.totalorder %s24, %s27
      %p33 = scmp.eq.s32.totalorder %s14, 0
      %p34 = por %p32, %p33
      %p35 = scmp.ne.s32.totalorder %s24, %s27
      %p36 = scmp.eq.s32.totalorder %s19, 1
      %p37 = por %p35, %p36
      %p38 = scmp.ne.s32.totalorder %s27, %s28
      %p39 = scmp.eq.s32.totalorder %s19, 0
      %p40 = por %p38, %p39
      %p41 = scmp.ne.s32.totalorder %s27, %s28
      %p42 = scmp.eq.s32.totalorder %s20, 1
      %p43 = por %p41, %p42
      %p45 = scmp.ne.s32.totalorder %s28, %s44
      %p46 = scmp.eq.s32.totalorder %s20, 0
      %p47 = por %p45, %p46
      %s49 = sadd.s32 %s48, 1
      %p52 = scmp.eq.s32.totalorder %s14, 1
      %p53 = scmp.ne.s32.totalorder %s48, %s50
      %p54 = scmp.eq.s32.totalorder %s14, 0
      %p55 = por %p53, %p54
      %p56 = scmp.ne.s32.totalorder %s48, %s50
      %p57 = scmp.eq.s32.totalorder %s19, 1
      %p58 = por %p56, %p57
      %p59 = scmp.ne.s32.totalorder %s50, %s51
      %p60 = scmp.eq.s32.totalorder %s19, 0
      %p61 = por %p59, %p60
      %p62 = scmp.ne.s32.totalorder %s50, %s51
      %p63 = scmp.eq.s32.totalorder %s20, 1
      %p64 = por %p62, %p63
      %p66 = scmp.ne.s32.totalorder %s51, %s65
      %p67 = scmp.eq.s32.totalorder %s20, 0
      %p68 = por %p66, %p67
      %s70 = sadd.s32 %s69, 1
      %p73 = scmp.eq.s32.totalorder %s14, 1
      %p74 = scmp.ne.s32.totalorder %s69, %s71
      %p75 = scmp.eq.s32.totalorder %s14, 0
      %p76 = por %p74, %p75
      %p77 = scmp.ne.s32.totalorder %s69, %s71
      %p78 = scmp.eq.s32.totalorder %s19, 1
      %p79 = por %p77, %p78
      %p80 = scmp.ne.s32.totalorder %s71, %s72
      %p81 = scmp.eq.s32.totalorder %s19, 0
      %p82 = por %p80, %p81
      %p83 = scmp.ne.s32.totalorder %s71, %s72
      %p84 = scmp.eq.s32.totalorder %s20, 1
      %p85 = por %p83, %p84
      %p87 = scmp.ne.s32.totalorder %s72, %s86
      %p88 = scmp.eq.s32.totalorder %s20, 0
      %p89 = por %p87, %p88
      %s91 = sadd.s32 %s90, 1
      %p94 = scmp.eq.s32.totalorder %s14, 1
      %p95 = scmp.ne.s32.totalorder %s90, %s92
      %p96 = scmp.eq.s32.totalorder %s14, 0
      %p97 = por %p95, %p96
      %p98 = scmp.ne.s32.totalorder %s90, %s92
      %p99 = scmp.eq.s32.totalorder %s19, 1
      %p100 = por %p98, %p99
      %p101 = scmp.ne.s32.totalorder %s92, %s93
      %p102 = scmp.eq.s32.totalorder %s19, 0
      %p103 = por %p101, %p102
      %p104 = scmp.ne.s32.totalorder %s92, %s93
      %p105 = scmp.eq.s32.totalorder %s20, 1
      %p106 = por %p104, %p105
      %p108 = scmp.ne.s32.totalorder %s93, %s107
      %p109 = scmp.eq.s32.totalorder %s20, 0
      %p110 = por %p108, %p109
      %s112 = sadd.s32 %s111, 1
      %p115 = scmp.eq.s32.totalorder %s14, 1
      %p116 = scmp.ne.s32.totalorder %s111, %s113
      %p117 = scmp.eq.s32.totalorder %s14, 0
      %p118 = por %p116, %p117
      %p119 = scmp.ne.s32.totalorder %s111, %s113
      %p120 = scmp.eq.s32.totalorder %s19, 1
      %p121 = por %p119, %p120
      %p122 = scmp.ne.s32.totalorder %s113, %s114
      %p123 = scmp.eq.s32.totalorder %s19, 0
      %p124 = por %p122, %p123
      %p125 = scmp.ne.s32.totalorder %s113, %s114
      %p126 = scmp.eq.s32.totalorder %s20, 1
      %p127 = por %p125, %p126
      %p129 = scmp.ne.s32.totalorder %s114, %s128
      %p130 = scmp.eq.s32.totalorder %s20, 0
      %p131 = por %p129, %p130
      %s132 = ssub.s32 %s14, %s21
      %p133 = scmp.eq.s32.totalorder %s132, 0
      %s135 = sadd.s32 %s134, 1
      %s136 = scalar_select %p133, %s134, %s135
      %p139 = pneg %p133
      %p140 = scmp.eq.s32.totalorder %s14, 1
      %p141 = por %p139, %p140
      %p142 = scmp.ne.s32.totalorder %s134, %s137
      %p143 = scmp.eq.s32.totalorder %s14, 0
      %p144 = por %p142, %p143
      %p145 = scmp.ne.s32.totalorder %s134, %s137
      %p146 = scmp.eq.s32.totalorder %s19, 1
      %p147 = por %p145, %p146
      %p148 = scmp.ne.s32.totalorder %s137, %s138
      %p149 = scmp.eq.s32.totalorder %s19, 0
      %p150 = por %p148, %p149
      %p151 = scmp.ne.s32.totalorder %s137, %s138
      %p152 = scmp.eq.s32.totalorder %s20, 1
      %p153 = por %p151, %p152
      %p155 = scmp.ne.s32.totalorder %s138, %s154
      %p156 = scmp.eq.s32.totalorder %s20, 0
      %p157 = por %p155, %p156
      %p158 = scmp.le.s32.totalorder 1, %s14
      %p159 = scmp.lt.s32.totalorder %s14, 3
      %p160 = pnand %p158, %p159
      %p161 = pneg %p160
      // Predicated region
      $region9: #{tpu_custom_call.1} parent=5 // pred_check
        _
      $region10: #{tpu_custom_call.1} parent=5 // pred_check_branch
        %163 = sbr.rel (%p160) target = $region12
      $region11: #{tpu_custom_call.1} parent=5 // pred_region
        %s164 = ssub.s32 %s14, 1
        // Predicated region
        $region13: #{tpu_custom_call.1} parent=11 // pred_check
          %p165 = pneg %p61
        $region14: #{tpu_custom_call.1} parent=11 // pred_check_branch
          %167 = sbr.rel (%p165) target = $region16
        $region15: #{tpu_custom_call.1} parent=11 // pred_region
          _
        $region16: #{tpu_custom_call.1} parent=11 // pred_fallthru
          _
        // Predicated region
        $region17: #{tpu_custom_call.1} parent=11 // pred_check
          %p168 = pneg %p82
        $region18: #{tpu_custom_call.1} parent=11 // pred_check_branch
          %170 = sbr.rel (%p168) target = $region20
        $region19: #{tpu_custom_call.1} parent=11 // pred_region
          _
        $region20: #{tpu_custom_call.1} parent=11 // pred_fallthru
          _
        // Predicated region
        $region21: #{tpu_custom_call.1} parent=11 // pred_check
          %p171 = pneg %p103
        $region22: #{tpu_custom_call.1} parent=11 // pred_check_branch
          %173 = sbr.rel (%p171) target = $region24
        $region23: #{tpu_custom_call.1} parent=11 // pred_region
          _
        $region24: #{tpu_custom_call.1} parent=11 // pred_fallthru
          _
        // Predicated region
        $region25: #{tpu_custom_call.1} parent=11 // pred_check
          %p174 = pneg %p124
        $region26: #{tpu_custom_call.1} parent=11 // pred_check_branch
          %176 = sbr.rel (%p174) target = $region28
        $region27: #{tpu_custom_call.1} parent=11 // pred_region
          _
        $region28: #{tpu_custom_call.1} parent=11 // pred_fallthru
          _
      $region12: #{tpu_custom_call.1} parent=5 // pred_fallthru
        _
      %p177 = scmp.lt.s32.totalorder %s14, 2
      // Predicated region
      $region29: #{tpu_custom_call.1} parent=5 // pred_check
        %p178 = pneg %p177
      $region30: #{tpu_custom_call.1} parent=5 // pred_check_branch
        %180 = sbr.rel (%p178) target = $region32
      $region31: #{tpu_custom_call.1} parent=5 // pred_region
        // Predicated region
        $region33: #{tpu_custom_call.1} parent=31 // pred_check
          %p181 = pneg %p34
        $region34: #{tpu_custom_call.1} parent=31 // pred_check_branch
          %183 = sbr.rel (%p181) target = $region36
        $region35: #{tpu_custom_call.1} parent=31 // pred_region
          %s184 = smul.u32 16, %s14
          %p185 = scmp.lt.s32.totalorder %s184, 31
          %s186 = scalar_select %p185, %s184, 31
          %s187 = smul.addr %s186, 8
          %s188 = scalar_lea.vmem %s0, %s187
          %s189 = smul.u32 16, %s14
        $region36: #{tpu_custom_call.1} parent=31 // pred_fallthru
          _
      $region32: #{tpu_custom_call.1} parent=5 // pred_fallthru
        _
      %p190 = scmp.le.s32.totalorder 1, %s14
      %p191 = scmp.lt.s32.totalorder %s14, 3
      %p192 = pnand %p190, %p191
      %p193 = pneg %p192
      // Predicated region
      $region37: #{tpu_custom_call.1} parent=5 // pred_check
        _
      $region38: #{tpu_custom_call.1} parent=5 // pred_check_branch
        %195 = sbr.rel (%p192) target = $region40
      $region39: #{tpu_custom_call.1} parent=5 // pred_region
        %s196 = ssub.s32 %s14, 1
        %s197 = smul.u32 16, %s19
        %p198 = scmp.lt.s32.totalorder %s197, 31
        %s199 = scalar_select %p198, %s197, 31
        %s200 = smul.addr %s199, 8
        %s201 = scalar_lea.vmem %s0, %s200
        %p202 = pneg %p40
        %p203 = pneg %p37
        %p204 = pneg %p61
        %p205 = pneg %p58
        %p206 = pneg %p82
        %p207 = pneg %p79
        %p208 = pneg %p103
        %p209 = pneg %p100
        %p210 = pneg %p124
        %p211 = pneg %p121
        %p212 = pneg %p150
        %p213 = pneg %p147
        %s214 = sand.u32 %s137, 1
        %s215 = scalar_lea.sflag [#allocation3], %s214
        %s216 = sand.u32 %s137, 1
        %s217 = smul.addr %s216, 128
        %s218 = scalar_lea.vmem [#allocation2], %s217
        %s219 = smul.u32 16, %s19
        %p220 = scmp.lt.s32.totalorder %s219, 31
        %s221 = scalar_select %p220, %s219, 31
        %s222 = smul.addr %s221, 8
        %s223 = scalar_lea.vmem %s0, %s222
        %s224 = smul.u32 16, %s19
        %s225 = smul.u32 16, %s19
        %v226 = vld [vmem:[%s223] sm:$0xff]
        %v227 = vld [vmem:[%s223 + $0x8] sm:$0xff]
        %v228 = vld [vmem:[%s223 + $0x10] sm:$0xff]
        %v229 = vld [vmem:[%s223 + $0x18] sm:$0xff]
        %v230 = vld [vmem:[%s223 + $0x20] sm:$0xff]
        %v231 = vld [vmem:[%s223 + $0x28] sm:$0xff]
        %v232 = vld [vmem:[%s223 + $0x30] sm:$0xff]
        %v233 = vld [vmem:[%s223 + $0x38] sm:$0xff]
        %v234 = vld [vmem:[%s223 + $0x40] sm:$0xff]
        %v235 = vld [vmem:[%s223 + $0x48] sm:$0xff]
        %v236 = vld [vmem:[%s223 + $0x50] sm:$0xff]
        %v237 = vld [vmem:[%s223 + $0x58] sm:$0xff]
        %v238 = vld [vmem:[%s223 + $0x60] sm:$0xff]
        %v239 = vld [vmem:[%s223 + $0x68] sm:$0xff]
        %v240 = vld [vmem:[%s223 + $0x70] sm:$0xff]
        %v241 = vld [vmem:[%s223 + $0x78] sm:$0xff]
        %v242 = vlaneseq
        %v243 = vand.u32 %v242, 127
        %v244 = vld [vmem:[%s2] sm:$0x1]
        %245 = vset.pattern.permute.xlu0 0
        %246 = vperm.xlu0 %245, %v226
        %v247 = vpop.permute.xlu0 %246
        %248 = vset.pattern.permute.xlu0 0
        %249 = vperm.xlu0 %248, %v227
        %v250 = vpop.permute.xlu0 %249
        %251 = vset.pattern.permute.xlu0 0
        %252 = vperm.xlu0 %251, %v228
        %v253 = vpop.permute.xlu0 %252
        %254 = vset.pattern.permute.xlu0 0
        %255 = vperm.xlu0 %254, %v229
        %v256 = vpop.permute.xlu0 %255
        %257 = vset.pattern.permute.xlu0 0
        %258 = vperm.xlu0 %257, %v230
        %v259 = vpop.permute.xlu0 %258
        %260 = vset.pattern.permute.xlu0 0
        %261 = vperm.xlu0 %260, %v231
        %v262 = vpop.permute.xlu0 %261
        %263 = vset.pattern.permute.xlu0 0
        %264 = vperm.xlu0 %263, %v232
        %v265 = vpop.permute.xlu0 %264
        %266 = vset.pattern.permute.xlu0 0
        %267 = vperm.xlu0 %266, %v233
        %v268 = vpop.permute.xlu0 %267
        %269 = vset.pattern.permute.xlu0 0
        %270 = vperm.xlu0 %269, %v234
        %v271 = vpop.permute.xlu0 %270
        %272 = vset.pattern.permute.xlu0 0
        %273 = vperm.xlu0 %272, %v235
        %v274 = vpop.permute.xlu0 %273
        %275 = vset.pattern.permute.xlu0 0
        %276 = vperm.xlu0 %275, %v236
        %v277 = vpop.permute.xlu0 %276
        %278 = vset.pattern.permute.xlu0 0
        %279 = vperm.xlu0 %278, %v237
        %v280 = vpop.permute.xlu0 %279
        %281 = vset.pattern.permute.xlu0 0
        %282 = vperm.xlu0 %281, %v238
        %v283 = vpop.permute.xlu0 %282
        %284 = vset.pattern.permute.xlu0 0
        %285 = vperm.xlu0 %284, %v239
        %v286 = vpop.permute.xlu0 %285
        %287 = vset.pattern.permute.xlu0 0
        %288 = vperm.xlu0 %287, %v240
        %v289 = vpop.permute.xlu0 %288
        %290 = vset.pattern.permute.xlu0 0
        %291 = vperm.xlu0 %290, %v241
        %v292 = vpop.permute.xlu0 %291
        %vm293 = vcmp.eq.s32.totalorder %v247, %v243
        %vm294 = vcmp.eq.s32.totalorder %v250, %v243
        %vm295 = vcmp.eq.s32.totalorder %v253, %v243
        %vm296 = vcmp.eq.s32.totalorder %v256, %v243
        %vm297 = vcmp.eq.s32.totalorder %v259, %v243
        %vm298 = vcmp.eq.s32.totalorder %v262, %v243
        %vm299 = vcmp.eq.s32.totalorder %v265, %v243
        %vm300 = vcmp.eq.s32.totalorder %v268, %v243
        %vm301 = vcmp.eq.s32.totalorder %v271, %v243
        %vm302 = vcmp.eq.s32.totalorder %v274, %v243
        %vm303 = vcmp.eq.s32.totalorder %v277, %v243
        %vm304 = vcmp.eq.s32.totalorder %v280, %v243
        %vm305 = vcmp.eq.s32.totalorder %v283, %v243
        %vm306 = vcmp.eq.s32.totalorder %v286, %v243
        %vm307 = vcmp.eq.s32.totalorder %v289, %v243
        %vm308 = vcmp.eq.s32.totalorder %v292, %v243
        %v309 = vsel %vm293, 1, 0
        %v310 = vsel %vm294, 1, 0
        %v311 = vsel %vm295, 1, 0
        %v312 = vsel %vm296, 1, 0
        %v313 = vsel %vm297, 1, 0
        %v314 = vsel %vm298, 1, 0
        %v315 = vsel %vm299, 1, 0
        %v316 = vsel %vm300, 1, 0
        %v317 = vsel %vm301, 1, 0
        %v318 = vsel %vm302, 1, 0
        %v319 = vsel %vm303, 1, 0
        %v320 = vsel %vm304, 1, 0
        %v321 = vsel %vm305, 1, 0
        %v322 = vsel %vm306, 1, 0
        %v323 = vsel %vm307, 1, 0
        %v324 = vsel %vm308, 1, 0
        %v325 = vcvt.s32.f32 %v309
        %v326 = vcvt.s32.f32 %v310
        %v327 = vcvt.s32.f32 %v311
        %v328 = vcvt.s32.f32 %v312
        %v329 = vcvt.s32.f32 %v313
        %v330 = vcvt.s32.f32 %v314
        %v331 = vcvt.s32.f32 %v315
        %v332 = vcvt.s32.f32 %v316
        %v333 = vcvt.s32.f32 %v317
        %v334 = vcvt.s32.f32 %v318
        %v335 = vcvt.s32.f32 %v319
        %v336 = vcvt.s32.f32 %v320
        %v337 = vcvt.s32.f32 %v321
        %v338 = vcvt.s32.f32 %v322
        %v339 = vcvt.s32.f32 %v323
        %v340 = vcvt.s32.f32 %v324
        %v341 = vld [vmem:[%s1] sm:$0xff]
        %v342 = vld [vmem:[%s1 + $0x8] sm:$0xff]
        %v343 = vld [vmem:[%s1 + $0x10] sm:$0xff]
        %v344 = vld [vmem:[%s1 + $0x18] sm:$0xff]
        %vm345 = vcmask 261120
        %v347 = vsel %vm345, %v325, 0
        %v350 = vsel %vm345, %v326, 0
        %v353 = vsel %vm345, %v327, 0
        %v356 = vsel %vm345, %v328, 0
        %v359 = vsel %vm345, %v329, 0
        %v362 = vsel %vm345, %v330, 0
        %v365 = vsel %vm345, %v331, 0
        %v368 = vsel %vm345, %v332, 0
        %v371 = vsel %vm345, %v333, 0
        %v374 = vsel %vm345, %v334, 0
        %v377 = vsel %vm345, %v335, 0
        %v380 = vsel %vm345, %v336, 0
        %v383 = vsel %vm345, %v337, 0
        %v386 = vsel %vm345, %v338, 0
        %v389 = vsel %vm345, %v339, 0
        %v392 = vsel %vm345, %v340, 0
        %394 = vmatpush.msra.mxu0 0.0
        %395 = vmatpush.msra.mxu0 0.0
        %396 = vmatpush.msra.mxu0 0.0
        %397 = vmatpush.msra.mxu0 0.0
        %398 = vmatpush.msra.mxu0 0.0
        %399 = vmatpush.msra.mxu0 0.0
        %400 = vmatpush.msra.mxu0 0.0
        %401 = vmatpush.msra.mxu0 0.0
        %402 = vmatpush.msra.mxu0 0.0
        %403 = vmatpush.msra.mxu0 0.0
        %404 = vmatpush.msra.mxu0 0.0
        %405 = vmatpush.msra.mxu0 0.0
        %406 = vmatpush.msra.mxu0 %v344
        %407 = vmatpush.msra.mxu0 %v343
        %408 = vmatpush.msra.mxu0 %v342
        %409 = vmatpush.msra.mxu0 %v341
        %410 = vmatmul.f32.gmra.mxu0 %v347
        %v411 = vpop.f32.mrf.mxu0
        %v412 = vadd.f32 0.0, %v411
        %413 = vmatmul.f32.gmra.mxu0 %v350
        %v414 = vpop.f32.mrf.mxu0
        %v415 = vadd.f32 0.0, %v414
        %416 = vmatmul.f32.gmra.mxu0 %v353
        %v417 = vpop.f32.mrf.mxu0
        %v418 = vadd.f32 0.0, %v417
        %419 = vmatmul.f32.gmra.mxu0 %v356
        %v420 = vpop.f32.mrf.mxu0
        %v421 = vadd.f32 0.0, %v420
        %422 = vmatmul.f32.gmra.mxu0 %v359
        %v423 = vpop.f32.mrf.mxu0
        %v424 = vadd.f32 0.0, %v423
        %425 = vmatmul.f32.gmra.mxu0 %v362
        %v426 = vpop.f32.mrf.mxu0
        %v427 = vadd.f32 0.0, %v426
        %428 = vmatmul.f32.gmra.mxu0 %v365
        %v429 = vpop.f32.mrf.mxu0
        %v430 = vadd.f32 0.0, %v429
        %431 = vmatmul.f32.gmra.mxu0 %v368
        %v432 = vpop.f32.mrf.mxu0
        %v433 = vadd.f32 0.0, %v432
        %434 = vmatmul.f32.gmra.mxu0 %v371
        %v435 = vpop.f32.mrf.mxu0
        %v436 = vadd.f32 0.0, %v435
        %437 = vmatmul.f32.gmra.mxu0 %v374
        %v438 = vpop.f32.mrf.mxu0
        %v439 = vadd.f32 0.0, %v438
        %440 = vmatmul.f32.gmra.mxu0 %v377
        %v441 = vpop.f32.mrf.mxu0
        %v442 = vadd.f32 0.0, %v441
        %443 = vmatmul.f32.gmra.mxu0 %v380
        %v444 = vpop.f32.mrf.mxu0
        %v445 = vadd.f32 0.0, %v444
        %446 = vmatmul.f32.gmra.mxu0 %v383
        %v447 = vpop.f32.mrf.mxu0
        %v448 = vadd.f32 0.0, %v447
        %449 = vmatmul.f32.gmra.mxu0 %v386
        %v450 = vpop.f32.mrf.mxu0
        %v451 = vadd.f32 0.0, %v450
        %452 = vmatmul.f32.gmra.mxu0 %v389
        %v453 = vpop.f32.mrf.mxu0
        %v454 = vadd.f32 0.0, %v453
        %455 = vmatmul.f32.gmra.mxu0 %v392
        %v456 = vpop.f32.mrf.mxu0
        %v457 = vadd.f32 0.0, %v456
        %458 = vdwg.mxu0
        %v460 = vperm.slane %v244, 0
        %v462 = vadd.f32 %v460, %v412
        %v463 = vadd.f32 %v460, %v415
        %v464 = vadd.f32 %v460, %v418
        %v465 = vadd.f32 %v460, %v421
        %v466 = vadd.f32 %v460, %v424
        %v467 = vadd.f32 %v460, %v427
        %v468 = vadd.f32 %v460, %v430
        %v469 = vadd.f32 %v460, %v433
        %v470 = vadd.f32 %v460, %v436
        %v471 = vadd.f32 %v460, %v439
        %v472 = vadd.f32 %v460, %v442
        %v473 = vadd.f32 %v460, %v445
        %v474 = vadd.f32 %v460, %v448
        %v475 = vadd.f32 %v460, %v451
        %v476 = vadd.f32 %v460, %v454
        %v477 = vadd.f32 %v460, %v457
        %478 = vset.pattern.permute.xlu0 1
        %479 = vperm.xlu0 %478, %v226
        %v480 = vpop.permute.xlu0 %479
        %481 = vset.pattern.permute.xlu0 1
        %482 = vperm.xlu0 %481, %v227
        %v483 = vpop.permute.xlu0 %482
        %484 = vset.pattern.permute.xlu0 1
        %485 = vperm.xlu0 %484, %v228
        %v486 = vpop.permute.xlu0 %485
        %487 = vset.pattern.permute.xlu0 1
        %488 = vperm.xlu0 %487, %v229
        %v489 = vpop.permute.xlu0 %488
        %490 = vset.pattern.permute.xlu0 1
        %491 = vperm.xlu0 %490, %v230
        %v492 = vpop.permute.xlu0 %491
        %493 = vset.pattern.permute.xlu0 1
        %494 = vperm.xlu0 %493, %v231
        %v495 = vpop.permute.xlu0 %494
        %496 = vset.pattern.permute.xlu0 1
        %497 = vperm.xlu0 %496, %v232
        %v498 = vpop.permute.xlu0 %497
        %499 = vset.pattern.permute.xlu0 1
        %500 = vperm.xlu0 %499, %v233
        %v501 = vpop.permute.xlu0 %500
        %502 = vset.pattern.permute.xlu0 1
        %503 = vperm.xlu0 %502, %v234
        %v504 = vpop.permute.xlu0 %503
        %505 = vset.pattern.permute.xlu0 1
        %506 = vperm.xlu0 %505, %v235
        %v507 = vpop.permute.xlu0 %506
        %508 = vset.pattern.permute.xlu0 1
        %509 = vperm.xlu0 %508, %v236
        %v510 = vpop.permute.xlu0 %509
        %511 = vset.pattern.permute.xlu0 1
        %512 = vperm.xlu0 %511, %v237
        %v513 = vpop.permute.xlu0 %512
        %514 = vset.pattern.permute.xlu0 1
        %515 = vperm.xlu0 %514, %v238
        %v516 = vpop.permute.xlu0 %515
        %517 = vset.pattern.permute.xlu0 1
        %518 = vperm.xlu0 %517, %v239
        %v519 = vpop.permute.xlu0 %518
        %520 = vset.pattern.permute.xlu0 1
        %521 = vperm.xlu0 %520, %v240
        %v522 = vpop.permute.xlu0 %521
        %523 = vset.pattern.permute.xlu0 1
        %524 = vperm.xlu0 %523, %v241
        %v525 = vpop.permute.xlu0 %524
        %vm526 = vcmp.eq.s32.totalorder %v480, %v243
        %vm527 = vcmp.eq.s32.totalorder %v483, %v243
        %vm528 = vcmp.eq.s32.totalorder %v486, %v243
        %vm529 = vcmp.eq.s32.totalorder %v489, %v243
        %vm530 = vcmp.eq.s32.totalorder %v492, %v243
        %vm531 = vcmp.eq.s32.totalorder %v495, %v243
        %vm532 = vcmp.eq.s32.totalorder %v498, %v243
        %vm533 = vcmp.eq.s32.totalorder %v501, %v243
        %vm534 = vcmp.eq.s32.totalorder %v504, %v243
        %vm535 = vcmp.eq.s32.totalorder %v507, %v243
        %vm536 = vcmp.eq.s32.totalorder %v510, %v243
        %vm537 = vcmp.eq.s32.totalorder %v513, %v243
        %vm538 = vcmp.eq.s32.totalorder %v516, %v243
        %vm539 = vcmp.eq.s32.totalorder %v519, %v243
        %vm540 = vcmp.eq.s32.totalorder %v522, %v243
        %vm541 = vcmp.eq.s32.totalorder %v525, %v243
        %v542 = vsel %vm526, 1, 0
        %v543 = vsel %vm527, 1, 0
        %v544 = vsel %vm528, 1, 0
        %v545 = vsel %vm529, 1, 0
        %v546 = vsel %vm530, 1, 0
        %v547 = vsel %vm531, 1, 0
        %v548 = vsel %vm532, 1, 0
        %v549 = vsel %vm533, 1, 0
        %v550 = vsel %vm534, 1, 0
        %v551 = vsel %vm535, 1, 0
        %v552 = vsel %vm536, 1, 0
        %v553 = vsel %vm537, 1, 0
        %v554 = vsel %vm538, 1, 0
        %v555 = vsel %vm539, 1, 0
        %v556 = vsel %vm540, 1, 0
        %v557 = vsel %vm541, 1, 0
        %v558 = vcvt.s32.f32 %v542
        %v559 = vcvt.s32.f32 %v543
        %v560 = vcvt.s32.f32 %v544
        %v561 = vcvt.s32.f32 %v545
        %v562 = vcvt.s32.f32 %v546
        %v563 = vcvt.s32.f32 %v547
        %v564 = vcvt.s32.f32 %v548
        %v565 = vcvt.s32.f32 %v549
        %v566 = vcvt.s32.f32 %v550
        %v567 = vcvt.s32.f32 %v551
        %v568 = vcvt.s32.f32 %v552
        %v569 = vcvt.s32.f32 %v553
        %v570 = vcvt.s32.f32 %v554
        %v571 = vcvt.s32.f32 %v555
        %v572 = vcvt.s32.f32 %v556
        %v573 = vcvt.s32.f32 %v557
        %s574 = scalar_lea.vmem %s1, 32
        %v575 = vld [vmem:[%s574] sm:$0xff]
        %v576 = vld [vmem:[%s574 + $0x8] sm:$0xff]
        %v577 = vld [vmem:[%s574 + $0x10] sm:$0xff]
        %v578 = vld [vmem:[%s574 + $0x18] sm:$0xff]
        %v580 = vsel %vm345, %v558, 0
        %v583 = vsel %vm345, %v559, 0
        %v586 = vsel %vm345, %v560, 0
        %v589 = vsel %vm345, %v561, 0
        %v592 = vsel %vm345, %v562, 0
        %v595 = vsel %vm345, %v563, 0
        %v598 = vsel %vm345, %v564, 0
        %v601 = vsel %vm345, %v565, 0
        %v604 = vsel %vm345, %v566, 0
        %v607 = vsel %vm345, %v567, 0
        %v610 = vsel %vm345, %v568, 0
        %v613 = vsel %vm345, %v569, 0
        %v616 = vsel %vm345, %v570, 0
        %v619 = vsel %vm345, %v571, 0
        %v622 = vsel %vm345, %v572, 0
        %v625 = vsel %vm345, %v573, 0
        %627 = vmatpush.msra.mxu0 0.0
        %628 = vmatpush.msra.mxu0 0.0
        %629 = vmatpush.msra.mxu0 0.0
        %630 = vmatpush.msra.mxu0 0.0
        %631 = vmatpush.msra.mxu0 0.0
        %632 = vmatpush.msra.mxu0 0.0
        %633 = vmatpush.msra.mxu0 0.0
        %634 = vmatpush.msra.mxu0 0.0
        %635 = vmatpush.msra.mxu0 0.0
        %636 = vmatpush.msra.mxu0 0.0
        %637 = vmatpush.msra.mxu0 0.0
        %638 = vmatpush.msra.mxu0 0.0
        %639 = vmatpush.msra.mxu0 %v578
        %640 = vmatpush.msra.mxu0 %v577
        %641 = vmatpush.msra.mxu0 %v576
        %642 = vmatpush.msra.mxu0 %v575
        %643 = vmatmul.f32.gmra.mxu0 %v580
        %v644 = vpop.f32.mrf.mxu0
        %v645 = vadd.f32 0.0, %v644
        %646 = vmatmul.f32.gmra.mxu0 %v583
        %v647 = vpop.f32.mrf.mxu0
        %v648 = vadd.f32 0.0, %v647
        %649 = vmatmul.f32.gmra.mxu0 %v586
        %v650 = vpop.f32.mrf.mxu0
        %v651 = vadd.f32 0.0, %v650
        %652 = vmatmul.f32.gmra.mxu0 %v589
        %v653 = vpop.f32.mrf.mxu0
        %v654 = vadd.f32 0.0, %v653
        %655 = vmatmul.f32.gmra.mxu0 %v592
        %v656 = vpop.f32.mrf.mxu0
        %v657 = vadd.f32 0.0, %v656
        %658 = vmatmul.f32.gmra.mxu0 %v595
        %v659 = vpop.f32.mrf.mxu0
        %v660 = vadd.f32 0.0, %v659
        %661 = vmatmul.f32.gmra.mxu0 %v598
        %v662 = vpop.f32.mrf.mxu0
        %v663 = vadd.f32 0.0, %v662
        %664 = vmatmul.f32.gmra.mxu0 %v601
        %v665 = vpop.f32.mrf.mxu0
        %v666 = vadd.f32 0.0, %v665
        %667 = vmatmul.f32.gmra.mxu0 %v604
        %v668 = vpop.f32.mrf.mxu0
        %v669 = vadd.f32 0.0, %v668
        %670 = vmatmul.f32.gmra.mxu0 %v607
        %v671 = vpop.f32.mrf.mxu0
        %v672 = vadd.f32 0.0, %v671
        %673 = vmatmul.f32.gmra.mxu0 %v610
        %v674 = vpop.f32.mrf.mxu0
        %v675 = vadd.f32 0.0, %v674
        %676 = vmatmul.f32.gmra.mxu0 %v613
        %v677 = vpop.f32.mrf.mxu0
        %v678 = vadd.f32 0.0, %v677
        %679 = vmatmul.f32.gmra.mxu0 %v616
        %v680 = vpop.f32.mrf.mxu0
        %v681 = vadd.f32 0.0, %v680
        %682 = vmatmul.f32.gmra.mxu0 %v619
        %v683 = vpop.f32.mrf.mxu0
        %v684 = vadd.f32 0.0, %v683
        %685 = vmatmul.f32.gmra.mxu0 %v622
        %v686 = vpop.f32.mrf.mxu0
        %v687 = vadd.f32 0.0, %v686
        %688 = vmatmul.f32.gmra.mxu0 %v625
        %v689 = vpop.f32.mrf.mxu0
        %v690 = vadd.f32 0.0, %v689
        %691 = vdwg.mxu0
        %v692 = vadd.f32 %v462, %v645
        %v693 = vadd.f32 %v463, %v648
        %v694 = vadd.f32 %v464, %v651
        %v695 = vadd.f32 %v465, %v654
        %v696 = vadd.f32 %v466, %v657
        %v697 = vadd.f32 %v467, %v660
        %v698 = vadd.f32 %v468, %v663
        %v699 = vadd.f32 %v469, %v666
        %v700 = vadd.f32 %v470, %v669
        %v701 = vadd.f32 %v471, %v672
        %v702 = vadd.f32 %v472, %v675
        %v703 = vadd.f32 %v473, %v678
        %v704 = vadd.f32 %v474, %v681
        %v705 = vadd.f32 %v475, %v684
        %v706 = vadd.f32 %v476, %v687
        %v707 = vadd.f32 %v477, %v690
        %708 = vset.pattern.permute.xlu0 2
        %709 = vperm.xlu0 %708, %v226
        %v710 = vpop.permute.xlu0 %709
        %711 = vset.pattern.permute.xlu0 2
        %712 = vperm.xlu0 %711, %v227
        %v713 = vpop.permute.xlu0 %712
        %714 = vset.pattern.permute.xlu0 2
        %715 = vperm.xlu0 %714, %v228
        %v716 = vpop.permute.xlu0 %715
        %717 = vset.pattern.permute.xlu0 2
        %718 = vperm.xlu0 %717, %v229
        %v719 = vpop.permute.xlu0 %718
        %720 = vset.pattern.permute.xlu0 2
        %721 = vperm.xlu0 %720, %v230
        %v722 = vpop.permute.xlu0 %721
        %723 = vset.pattern.permute.xlu0 2
        %724 = vperm.xlu0 %723, %v231
        %v725 = vpop.permute.xlu0 %724
        %726 = vset.pattern.permute.xlu0 2
        %727 = vperm.xlu0 %726, %v232
        %v728 = vpop.permute.xlu0 %727
        %729 = vset.pattern.permute.xlu0 2
        %730 = vperm.xlu0 %729, %v233
        %v731 = vpop.permute.xlu0 %730
        %732 = vset.pattern.permute.xlu0 2
        %733 = vperm.xlu0 %732, %v234
        %v734 = vpop.permute.xlu0 %733
        %735 = vset.pattern.permute.xlu0 2
        %736 = vperm.xlu0 %735, %v235
        %v737 = vpop.permute.xlu0 %736
        %738 = vset.pattern.permute.xlu0 2
        %739 = vperm.xlu0 %738, %v236
        %v740 = vpop.permute.xlu0 %739
        %741 = vset.pattern.permute.xlu0 2
        %742 = vperm.xlu0 %741, %v237
        %v743 = vpop.permute.xlu0 %742
        %744 = vset.pattern.permute.xlu0 2
        %745 = vperm.xlu0 %744, %v238
        %v746 = vpop.permute.xlu0 %745
        %747 = vset.pattern.permute.xlu0 2
        %748 = vperm.xlu0 %747, %v239
        %v749 = vpop.permute.xlu0 %748
        %750 = vset.pattern.permute.xlu0 2
        %751 = vperm.xlu0 %750, %v240
        %v752 = vpop.permute.xlu0 %751
        %753 = vset.pattern.permute.xlu0 2
        %754 = vperm.xlu0 %753, %v241
        %v755 = vpop.permute.xlu0 %754
        %vm756 = vcmp.eq.s32.totalorder %v710, %v243
        %vm757 = vcmp.eq.s32.totalorder %v713, %v243
        %vm758 = vcmp.eq.s32.totalorder %v716, %v243
        %vm759 = vcmp.eq.s32.totalorder %v719, %v243
        %vm760 = vcmp.eq.s32.totalorder %v722, %v243
        %vm761 = vcmp.eq.s32.totalorder %v725, %v243
        %vm762 = vcmp.eq.s32.totalorder %v728, %v243
        %vm763 = vcmp.eq.s32.totalorder %v731, %v243
        %vm764 = vcmp.eq.s32.totalorder %v734, %v243
        %vm765 = vcmp.eq.s32.totalorder %v737, %v243
        %vm766 = vcmp.eq.s32.totalorder %v740, %v243
        %vm767 = vcmp.eq.s32.totalorder %v743, %v243
        %vm768 = vcmp.eq.s32.totalorder %v746, %v243
        %vm769 = vcmp.eq.s32.totalorder %v749, %v243
        %vm770 = vcmp.eq.s32.totalorder %v752, %v243
        %vm771 = vcmp.eq.s32.totalorder %v755, %v243
        %v772 = vsel %vm756, 1, 0
        %v773 = vsel %vm757, 1, 0
        %v774 = vsel %vm758, 1, 0
        %v775 = vsel %vm759, 1, 0
        %v776 = vsel %vm760, 1, 0
        %v777 = vsel %vm761, 1, 0
        %v778 = vsel %vm762, 1, 0
        %v779 = vsel %vm763, 1, 0
        %v780 = vsel %vm764, 1, 0
        %v781 = vsel %vm765, 1, 0
        %v782 = vsel %vm766, 1, 0
        %v783 = vsel %vm767, 1, 0
        %v784 = vsel %vm768, 1, 0
        %v785 = vsel %vm769, 1, 0
        %v786 = vsel %vm770, 1, 0
        %v787 = vsel %vm771, 1, 0
        %v788 = vcvt.s32.f32 %v772
        %v789 = vcvt.s32.f32 %v773
        %v790 = vcvt.s32.f32 %v774
        %v791 = vcvt.s32.f32 %v775
        %v792 = vcvt.s32.f32 %v776
        %v793 = vcvt.s32.f32 %v777
        %v794 = vcvt.s32.f32 %v778
        %v795 = vcvt.s32.f32 %v779
        %v796 = vcvt.s32.f32 %v780
        %v797 = vcvt.s32.f32 %v781
        %v798 = vcvt.s32.f32 %v782
        %v799 = vcvt.s32.f32 %v783
        %v800 = vcvt.s32.f32 %v784
        %v801 = vcvt.s32.f32 %v785
        %v802 = vcvt.s32.f32 %v786
        %v803 = vcvt.s32.f32 %v787
        %s804 = scalar_lea.vmem %s1, 64
        %v805 = vld [vmem:[%s804] sm:$0xff]
        %v806 = vld [vmem:[%s804 + $0x8] sm:$0xff]
        %v807 = vld [vmem:[%s804 + $0x10] sm:$0xff]
        %v808 = vld [vmem:[%s804 + $0x18] sm:$0xff]
        %v810 = vsel %vm345, %v788, 0
        %v813 = vsel %vm345, %v789, 0
        %v816 = vsel %vm345, %v790, 0
        %v819 = vsel %vm345, %v791, 0
        %v822 = vsel %vm345, %v792, 0
        %v825 = vsel %vm345, %v793, 0
        %v828 = vsel %vm345, %v794, 0
        %v831 = vsel %vm345, %v795, 0
        %v834 = vsel %vm345, %v796, 0
        %v837 = vsel %vm345, %v797, 0
        %v840 = vsel %vm345, %v798, 0
        %v843 = vsel %vm345, %v799, 0
        %v846 = vsel %vm345, %v800, 0
        %v849 = vsel %vm345, %v801, 0
        %v852 = vsel %vm345, %v802, 0
        %v855 = vsel %vm345, %v803, 0
        %857 = vmatpush.msra.mxu0 0.0
        %858 = vmatpush.msra.mxu0 0.0
        %859 = vmatpush.msra.mxu0 0.0
        %860 = vmatpush.msra.mxu0 0.0
        %861 = vmatpush.msra.mxu0 0.0
        %862 = vmatpush.msra.mxu0 0.0
        %863 = vmatpush.msra.mxu0 0.0
        %864 = vmatpush.msra.mxu0 0.0
        %865 = vmatpush.msra.mxu0 0.0
        %866 = vmatpush.msra.mxu0 0.0
        %867 = vmatpush.msra.mxu0 0.0
        %868 = vmatpush.msra.mxu0 0.0
        %869 = vmatpush.msra.mxu0 %v808
        %870 = vmatpush.msra.mxu0 %v807
        %871 = vmatpush.msra.mxu0 %v806
        %872 = vmatpush.msra.mxu0 %v805
        %873 = vmatmul.f32.gmra.mxu0 %v810
        %v874 = vpop.f32.mrf.mxu0
        %v875 = vadd.f32 0.0, %v874
        %876 = vmatmul.f32.gmra.mxu0 %v813
        %v877 = vpop.f32.mrf.mxu0
        %v878 = vadd.f32 0.0, %v877
        %879 = vmatmul.f32.gmra.mxu0 %v816
        %v880 = vpop.f32.mrf.mxu0
        %v881 = vadd.f32 0.0, %v880
        %882 = vmatmul.f32.gmra.mxu0 %v819
        %v883 = vpop.f32.mrf.mxu0
        %v884 = vadd.f32 0.0, %v883
        %885 = vmatmul.f32.gmra.mxu0 %v822
        %v886 = vpop.f32.mrf.mxu0
        %v887 = vadd.f32 0.0, %v886
        %888 = vmatmul.f32.gmra.mxu0 %v825
        %v889 = vpop.f32.mrf.mxu0
        %v890 = vadd.f32 0.0, %v889
        %891 = vmatmul.f32.gmra.mxu0 %v828
        %v892 = vpop.f32.mrf.mxu0
        %v893 = vadd.f32 0.0, %v892
        %894 = vmatmul.f32.gmra.mxu0 %v831
        %v895 = vpop.f32.mrf.mxu0
        %v896 = vadd.f32 0.0, %v895
        %897 = vmatmul.f32.gmra.mxu0 %v834
        %v898 = vpop.f32.mrf.mxu0
        %v899 = vadd.f32 0.0, %v898
        %900 = vmatmul.f32.gmra.mxu0 %v837
        %v901 = vpop.f32.mrf.mxu0
        %v902 = vadd.f32 0.0, %v901
        %903 = vmatmul.f32.gmra.mxu0 %v840
        %v904 = vpop.f32.mrf.mxu0
        %v905 = vadd.f32 0.0, %v904
        %906 = vmatmul.f32.gmra.mxu0 %v843
        %v907 = vpop.f32.mrf.mxu0
        %v908 = vadd.f32 0.0, %v907
        %909 = vmatmul.f32.gmra.mxu0 %v846
        %v910 = vpop.f32.mrf.mxu0
        %v911 = vadd.f32 0.0, %v910
        %912 = vmatmul.f32.gmra.mxu0 %v849
        %v913 = vpop.f32.mrf.mxu0
        %v914 = vadd.f32 0.0, %v913
        %915 = vmatmul.f32.gmra.mxu0 %v852
        %v916 = vpop.f32.mrf.mxu0
        %v917 = vadd.f32 0.0, %v916
        %918 = vmatmul.f32.gmra.mxu0 %v855
        %v919 = vpop.f32.mrf.mxu0
        %v920 = vadd.f32 0.0, %v919
        %921 = vdwg.mxu0
        %v922 = vadd.f32 %v692, %v875
        %v923 = vadd.f32 %v693, %v878
        %v924 = vadd.f32 %v694, %v881
        %v925 = vadd.f32 %v695, %v884
        %v926 = vadd.f32 %v696, %v887
        %v927 = vadd.f32 %v697, %v890
        %v928 = vadd.f32 %v698, %v893
        %v929 = vadd.f32 %v699, %v896
        %v930 = vadd.f32 %v700, %v899
        %v931 = vadd.f32 %v701, %v902
        %v932 = vadd.f32 %v702, %v905
        %v933 = vadd.f32 %v703, %v908
        %v934 = vadd.f32 %v704, %v911
        %v935 = vadd.f32 %v705, %v914
        %v936 = vadd.f32 %v706, %v917
        %v937 = vadd.f32 %v707, %v920
        %938 = vset.pattern.permute.xlu0 3
        %939 = vperm.xlu0 %938, %v226
        %v940 = vpop.permute.xlu0 %939
        %941 = vset.pattern.permute.xlu0 3
        %942 = vperm.xlu0 %941, %v227
        %v943 = vpop.permute.xlu0 %942
        %944 = vset.pattern.permute.xlu0 3
        %945 = vperm.xlu0 %944, %v228
        %v946 = vpop.permute.xlu0 %945
        %947 = vset.pattern.permute.xlu0 3
        %948 = vperm.xlu0 %947, %v229
        %v949 = vpop.permute.xlu0 %948
        %950 = vset.pattern.permute.xlu0 3
        %951 = vperm.xlu0 %950, %v230
        %v952 = vpop.permute.xlu0 %951
        %953 = vset.pattern.permute.xlu0 3
        %954 = vperm.xlu0 %953, %v231
        %v955 = vpop.permute.xlu0 %954
        %956 = vset.pattern.permute.xlu0 3
        %957 = vperm.xlu0 %956, %v232
        %v958 = vpop.permute.xlu0 %957
        %959 = vset.pattern.permute.xlu0 3
        %960 = vperm.xlu0 %959, %v233
        %v961 = vpop.permute.xlu0 %960
        %962 = vset.pattern.permute.xlu0 3
        %963 = vperm.xlu0 %962, %v234
        %v964 = vpop.permute.xlu0 %963
        %965 = vset.pattern.permute.xlu0 3
        %966 = vperm.xlu0 %965, %v235
        %v967 = vpop.permute.xlu0 %966
        %968 = vset.pattern.permute.xlu0 3
        %969 = vperm.xlu0 %968, %v236
        %v970 = vpop.permute.xlu0 %969
        %971 = vset.pattern.permute.xlu0 3
        %972 = vperm.xlu0 %971, %v237
        %v973 = vpop.permute.xlu0 %972
        %974 = vset.pattern.permute.xlu0 3
        %975 = vperm.xlu0 %974, %v238
        %v976 = vpop.permute.xlu0 %975
        %977 = vset.pattern.permute.xlu0 3
        %978 = vperm.xlu0 %977, %v239
        %v979 = vpop.permute.xlu0 %978
        %980 = vset.pattern.permute.xlu0 3
        %981 = vperm.xlu0 %980, %v240
        %v982 = vpop.permute.xlu0 %981
        %983 = vset.pattern.permute.xlu0 3
        %984 = vperm.xlu0 %983, %v241
        %v985 = vpop.permute.xlu0 %984
        %vm986 = vcmp.eq.s32.totalorder %v940, %v243
        %vm987 = vcmp.eq.s32.totalorder %v943, %v243
        %vm988 = vcmp.eq.s32.totalorder %v946, %v243
        %vm989 = vcmp.eq.s32.totalorder %v949, %v243
        %vm990 = vcmp.eq.s32.totalorder %v952, %v243
        %vm991 = vcmp.eq.s32.totalorder %v955, %v243
        %vm992 = vcmp.eq.s32.totalorder %v958, %v243
        %vm993 = vcmp.eq.s32.totalorder %v961, %v243
        %vm994 = vcmp.eq.s32.totalorder %v964, %v243
        %vm995 = vcmp.eq.s32.totalorder %v967, %v243
        %vm996 = vcmp.eq.s32.totalorder %v970, %v243
        %vm997 = vcmp.eq.s32.totalorder %v973, %v243
        %vm998 = vcmp.eq.s32.totalorder %v976, %v243
        %vm999 = vcmp.eq.s32.totalorder %v979, %v243
        %vm1000 = vcmp.eq.s32.totalorder %v982, %v243
        %vm1001 = vcmp.eq.s32.totalorder %v985, %v243
        %v1002 = vsel %vm986, 1, 0
        %v1003 = vsel %vm987, 1, 0
        %v1004 = vsel %vm988, 1, 0
        %v1005 = vsel %vm989, 1, 0
        %v1006 = vsel %vm990, 1, 0
        %v1007 = vsel %vm991, 1, 0
        %v1008 = vsel %vm992, 1, 0
        %v1009 = vsel %vm993, 1, 0
        %v1010 = vsel %vm994, 1, 0
        %v1011 = vsel %vm995, 1, 0
        %v1012 = vsel %vm996, 1, 0
        %v1013 = vsel %vm997, 1, 0
        %v1014 = vsel %vm998, 1, 0
        %v1015 = vsel %vm999, 1, 0
        %v1016 = vsel %vm1000, 1, 0
        %v1017 = vsel %vm1001, 1, 0
        %v1018 = vcvt.s32.f32 %v1002
        %v1019 = vcvt.s32.f32 %v1003
        %v1020 = vcvt.s32.f32 %v1004
        %v1021 = vcvt.s32.f32 %v1005
        %v1022 = vcvt.s32.f32 %v1006
        %v1023 = vcvt.s32.f32 %v1007
        %v1024 = vcvt.s32.f32 %v1008
        %v1025 = vcvt.s32.f32 %v1009
        %v1026 = vcvt.s32.f32 %v1010
        %v1027 = vcvt.s32.f32 %v1011
        %v1028 = vcvt.s32.f32 %v1012
        %v1029 = vcvt.s32.f32 %v1013
        %v1030 = vcvt.s32.f32 %v1014
        %v1031 = vcvt.s32.f32 %v1015
        %v1032 = vcvt.s32.f32 %v1016
        %v1033 = vcvt.s32.f32 %v1017
        %s1034 = scalar_lea.vmem %s1, 96
        %v1035 = vld [vmem:[%s1034] sm:$0xff]
        %v1036 = vld [vmem:[%s1034 + $0x8] sm:$0xff]
        %v1037 = vld [vmem:[%s1034 + $0x10] sm:$0xff]
        %v1038 = vld [vmem:[%s1034 + $0x18] sm:$0xff]
        %v1040 = vsel %vm345, %v1018, 0
        %v1043 = vsel %vm345, %v1019, 0
        %v1046 = vsel %vm345, %v1020, 0
        %v1049 = vsel %vm345, %v1021, 0
        %v1052 = vsel %vm345, %v1022, 0
        %v1055 = vsel %vm345, %v1023, 0
        %v1058 = vsel %vm345, %v1024, 0
        %v1061 = vsel %vm345, %v1025, 0
        %v1064 = vsel %vm345, %v1026, 0
        %v1067 = vsel %vm345, %v1027, 0
        %v1070 = vsel %vm345, %v1028, 0
        %v1073 = vsel %vm345, %v1029, 0
        %v1076 = vsel %vm345, %v1030, 0
        %v1079 = vsel %vm345, %v1031, 0
        %v1082 = vsel %vm345, %v1032, 0
        %v1085 = vsel %vm345, %v1033, 0
        %1087 = vmatpush.msra.mxu0 0.0
        %1088 = vmatpush.msra.mxu0 0.0
        %1089 = vmatpush.msra.mxu0 0.0
        %1090 = vmatpush.msra.mxu0 0.0
        %1091 = vmatpush.msra.mxu0 0.0
        %1092 = vmatpush.msra.mxu0 0.0
        %1093 = vmatpush.msra.mxu0 0.0
        %1094 = vmatpush.msra.mxu0 0.0
        %1095 = vmatpush.msra.mxu0 0.0
        %1096 = vmatpush.msra.mxu0 0.0
        %1097 = vmatpush.msra.mxu0 0.0
        %1098 = vmatpush.msra.mxu0 0.0
        %1099 = vmatpush.msra.mxu0 %v1038
        %1100 = vmatpush.msra.mxu0 %v1037
        %1101 = vmatpush.msra.mxu0 %v1036
        %1102 = vmatpush.msra.mxu0 %v1035
        %1103 = vmatmul.f32.gmra.mxu0 %v1040
        %v1104 = vpop.f32.mrf.mxu0
        %v1105 = vadd.f32 0.0, %v1104
        %1106 = vmatmul.f32.gmra.mxu0 %v1043
        %v1107 = vpop.f32.mrf.mxu0
        %v1108 = vadd.f32 0.0, %v1107
        %1109 = vmatmul.f32.gmra.mxu0 %v1046
        %v1110 = vpop.f32.mrf.mxu0
        %v1111 = vadd.f32 0.0, %v1110
        %1112 = vmatmul.f32.gmra.mxu0 %v1049
        %v1113 = vpop.f32.mrf.mxu0
        %v1114 = vadd.f32 0.0, %v1113
        %1115 = vmatmul.f32.gmra.mxu0 %v1052
        %v1116 = vpop.f32.mrf.mxu0
        %v1117 = vadd.f32 0.0, %v1116
        %1118 = vmatmul.f32.gmra.mxu0 %v1055
        %v1119 = vpop.f32.mrf.mxu0
        %v1120 = vadd.f32 0.0, %v1119
        %1121 = vmatmul.f32.gmra.mxu0 %v1058
        %v1122 = vpop.f32.mrf.mxu0
        %v1123 = vadd.f32 0.0, %v1122
        %1124 = vmatmul.f32.gmra.mxu0 %v1061
        %v1125 = vpop.f32.mrf.mxu0
        %v1126 = vadd.f32 0.0, %v1125
        %1127 = vmatmul.f32.gmra.mxu0 %v1064
        %v1128 = vpop.f32.mrf.mxu0
        %v1129 = vadd.f32 0.0, %v1128
        %1130 = vmatmul.f32.gmra.mxu0 %v1067
        %v1131 = vpop.f32.mrf.mxu0
        %v1132 = vadd.f32 0.0, %v1131
        %1133 = vmatmul.f32.gmra.mxu0 %v1070
        %v1134 = vpop.f32.mrf.mxu0
        %v1135 = vadd.f32 0.0, %v1134
        %1136 = vmatmul.f32.gmra.mxu0 %v1073
        %v1137 = vpop.f32.mrf.mxu0
        %v1138 = vadd.f32 0.0, %v1137
        %1139 = vmatmul.f32.gmra.mxu0 %v1076
        %v1140 = vpop.f32.mrf.mxu0
        %v1141 = vadd.f32 0.0, %v1140
        %1142 = vmatmul.f32.gmra.mxu0 %v1079
        %v1143 = vpop.f32.mrf.mxu0
        %v1144 = vadd.f32 0.0, %v1143
        %1145 = vmatmul.f32.gmra.mxu0 %v1082
        %v1146 = vpop.f32.mrf.mxu0
        %v1147 = vadd.f32 0.0, %v1146
        %1148 = vmatmul.f32.gmra.mxu0 %v1085
        %v1149 = vpop.f32.mrf.mxu0
        %v1150 = vadd.f32 0.0, %v1149
        %1151 = vdwg.mxu0
        %v1152 = vadd.f32 %v922, %v1105
        %v1153 = vadd.f32 %v923, %v1108
        %v1154 = vadd.f32 %v924, %v1111
        %v1155 = vadd.f32 %v925, %v1114
        %v1156 = vadd.f32 %v926, %v1117
        %v1157 = vadd.f32 %v927, %v1120
        %v1158 = vadd.f32 %v928, %v1123
        %v1159 = vadd.f32 %v929, %v1126
        %v1160 = vadd.f32 %v930, %v1129
        %v1161 = vadd.f32 %v931, %v1132
        %v1162 = vadd.f32 %v932, %v1135
        %v1163 = vadd.f32 %v933, %v1138
        %v1164 = vadd.f32 %v934, %v1141
        %v1165 = vadd.f32 %v935, %v1144
        %v1166 = vadd.f32 %v936, %v1147
        %v1167 = vadd.f32 %v937, %v1150
        %v1168 = vmax.f32 %v1152, 0.0
        %v1169 = vmax.f32 %v1153, 0.0
        %v1170 = vmax.f32 %v1154, 0.0
        %v1171 = vmax.f32 %v1155, 0.0
        %v1172 = vmax.f32 %v1156, 0.0
        %v1173 = vmax.f32 %v1157, 0.0
        %v1174 = vmax.f32 %v1158, 0.0
        %v1175 = vmax.f32 %v1159, 0.0
        %v1176 = vmax.f32 %v1160, 0.0
        %v1177 = vmax.f32 %v1161, 0.0
        %v1178 = vmax.f32 %v1162, 0.0
        %v1179 = vmax.f32 %v1163, 0.0
        %v1180 = vmax.f32 %v1164, 0.0
        %v1181 = vmax.f32 %v1165, 0.0
        %v1182 = vmax.f32 %v1166, 0.0
        %v1183 = vmax.f32 %v1167, 0.0
        %v1184 = vld [vmem:[%s3] sm:$0xff]
        %v1185 = vld [vmem:[%s3 + $0x8] sm:$0xff]
        %v1186 = vld [vmem:[%s3 + $0x10] sm:$0xff]
        %v1187 = vld [vmem:[%s3 + $0x18] sm:$0xff]
        %v1188 = vld [vmem:[%s4] sm:$0x1]
        %v1190 = vperm.slane %v1188, 0
        %v1193 = vsel %vm345, %v1168, 0
        %v1196 = vsel %vm345, %v1169, 0
        %v1199 = vsel %vm345, %v1170, 0
        %v1202 = vsel %vm345, %v1171, 0
        %v1205 = vsel %vm345, %v1172, 0
        %v1208 = vsel %vm345, %v1173, 0
        %v1211 = vsel %vm345, %v1174, 0
        %v1214 = vsel %vm345, %v1175, 0
        %v1217 = vsel %vm345, %v1176, 0
        %v1220 = vsel %vm345, %v1177, 0
        %v1223 = vsel %vm345, %v1178, 0
        %v1226 = vsel %vm345, %v1179, 0
        %v1229 = vsel %vm345, %v1180, 0
        %v1232 = vsel %vm345, %v1181, 0
        %v1235 = vsel %vm345, %v1182, 0
        %v1238 = vsel %vm345, %v1183, 0
        %1240 = vmatpush.msra.mxu0 0.0
        %1241 = vmatpush.msra.mxu0 0.0
        %1242 = vmatpush.msra.mxu0 0.0
        %1243 = vmatpush.msra.mxu0 0.0
        %1244 = vmatpush.msra.mxu0 0.0
        %1245 = vmatpush.msra.mxu0 0.0
        %1246 = vmatpush.msra.mxu0 0.0
        %1247 = vmatpush.msra.mxu0 0.0
        %1248 = vmatpush.msra.mxu0 0.0
        %1249 = vmatpush.msra.mxu0 0.0
        %1250 = vmatpush.msra.mxu0 0.0
        %1251 = vmatpush.msra.mxu0 0.0
        %1252 = vmatpush.msra.mxu0 %v1187
        %1253 = vmatpush.msra.mxu0 %v1186
        %1254 = vmatpush.msra.mxu0 %v1185
        %1255 = vmatpush.msra.mxu0 %v1184
        %1256 = vmatmul.f32.gmra.mxu0 %v1193
        %v1257 = vpop.f32.mrf.mxu0
        %v1258 = vadd.f32 %v1190, %v1257
        %1259 = vmatmul.f32.gmra.mxu0 %v1196
        %v1260 = vpop.f32.mrf.mxu0
        %v1261 = vadd.f32 %v1190, %v1260
        %1262 = vmatmul.f32.gmra.mxu0 %v1199
        %v1263 = vpop.f32.mrf.mxu0
        %v1264 = vadd.f32 %v1190, %v1263
        %1265 = vmatmul.f32.gmra.mxu0 %v1202
        %v1266 = vpop.f32.mrf.mxu0
        %v1267 = vadd.f32 %v1190, %v1266
        %1268 = vmatmul.f32.gmra.mxu0 %v1205
        %v1269 = vpop.f32.mrf.mxu0
        %v1270 = vadd.f32 %v1190, %v1269
        %1271 = vmatmul.f32.gmra.mxu0 %v1208
        %v1272 = vpop.f32.mrf.mxu0
        %v1273 = vadd.f32 %v1190, %v1272
        %1274 = vmatmul.f32.gmra.mxu0 %v1211
        %v1275 = vpop.f32.mrf.mxu0
        %v1276 = vadd.f32 %v1190, %v1275
        %1277 = vmatmul.f32.gmra.mxu0 %v1214
        %v1278 = vpop.f32.mrf.mxu0
        %v1279 = vadd.f32 %v1190, %v1278
        %1280 = vmatmul.f32.gmra.mxu0 %v1217
        %v1281 = vpop.f32.mrf.mxu0
        %v1282 = vadd.f32 %v1190, %v1281
        %1283 = vmatmul.f32.gmra.mxu0 %v1220
        %v1284 = vpop.f32.mrf.mxu0
        %v1285 = vadd.f32 %v1190, %v1284
        %1286 = vmatmul.f32.gmra.mxu0 %v1223
        %v1287 = vpop.f32.mrf.mxu0
        %v1288 = vadd.f32 %v1190, %v1287
        %1289 = vmatmul.f32.gmra.mxu0 %v1226
        %v1290 = vpop.f32.mrf.mxu0
        %v1291 = vadd.f32 %v1190, %v1290
        %1292 = vmatmul.f32.gmra.mxu0 %v1229
        %v1293 = vpop.f32.mrf.mxu0
        %v1294 = vadd.f32 %v1190, %v1293
        %1295 = vmatmul.f32.gmra.mxu0 %v1232
        %v1296 = vpop.f32.mrf.mxu0
        %v1297 = vadd.f32 %v1190, %v1296
        %1298 = vmatmul.f32.gmra.mxu0 %v1235
        %v1299 = vpop.f32.mrf.mxu0
        %v1300 = vadd.f32 %v1190, %v1299
        %1301 = vmatmul.f32.gmra.mxu0 %v1238
        %v1302 = vpop.f32.mrf.mxu0
        %v1303 = vadd.f32 %v1190, %v1302
        %1304 = vdwg.mxu0
        %1305 = vmax.xlane.f32.xlu0 %v1258
        %v1306 = vpop.xlane.xlu0 %1305
        %1307 = vmax.xlane.f32.xlu0 %v1261
        %v1308 = vpop.xlane.xlu0 %1307
        %1309 = vmax.xlane.f32.xlu0 %v1264
        %v1310 = vpop.xlane.xlu0 %1309
        %1311 = vmax.xlane.f32.xlu0 %v1267
        %v1312 = vpop.xlane.xlu0 %1311
        %1313 = vmax.xlane.f32.xlu0 %v1270
        %v1314 = vpop.xlane.xlu0 %1313
        %1315 = vmax.xlane.f32.xlu0 %v1273
        %v1316 = vpop.xlane.xlu0 %1315
        %1317 = vmax.xlane.f32.xlu0 %v1276
        %v1318 = vpop.xlane.xlu0 %1317
        %1319 = vmax.xlane.f32.xlu0 %v1279
        %v1320 = vpop.xlane.xlu0 %1319
        %1321 = vmax.xlane.f32.xlu0 %v1282
        %v1322 = vpop.xlane.xlu0 %1321
        %1323 = vmax.xlane.f32.xlu0 %v1285
        %v1324 = vpop.xlane.xlu0 %1323
        %1325 = vmax.xlane.f32.xlu0 %v1288
        %v1326 = vpop.xlane.xlu0 %1325
        %1327 = vmax.xlane.f32.xlu0 %v1291
        %v1328 = vpop.xlane.xlu0 %1327
        %1329 = vmax.xlane.f32.xlu0 %v1294
        %v1330 = vpop.xlane.xlu0 %1329
        %1331 = vmax.xlane.f32.xlu0 %v1297
        %v1332 = vpop.xlane.xlu0 %1331
        %1333 = vmax.xlane.f32.xlu0 %v1300
        %v1334 = vpop.xlane.xlu0 %1333
        %1335 = vmax.xlane.f32.xlu0 %v1303
        %v1336 = vpop.xlane.xlu0 %1335
        %v1337 = vsub.f32 %v1258, %v1306
        %v1338 = vsub.f32 %v1261, %v1308
        %v1339 = vsub.f32 %v1264, %v1310
        %v1340 = vsub.f32 %v1267, %v1312
        %v1341 = vsub.f32 %v1270, %v1314
        %v1342 = vsub.f32 %v1273, %v1316
        %v1343 = vsub.f32 %v1276, %v1318
        %v1344 = vsub.f32 %v1279, %v1320
        %v1345 = vsub.f32 %v1282, %v1322
        %v1346 = vsub.f32 %v1285, %v1324
        %v1347 = vsub.f32 %v1288, %v1326
        %v1348 = vsub.f32 %v1291, %v1328
        %v1349 = vsub.f32 %v1294, %v1330
        %v1350 = vsub.f32 %v1297, %v1332
        %v1351 = vsub.f32 %v1300, %v1334
        %v1352 = vsub.f32 %v1303, %v1336
        %v1353 = vmul.f32 %v1337, 1.442695
        %v1354 = vpow.pop %v1353
        %v1355 = vmul.f32 %v1338, 1.442695
        %v1356 = vpow.pop %v1355
        %v1357 = vmul.f32 %v1339, 1.442695
        %v1358 = vpow.pop %v1357
        %v1359 = vmul.f32 %v1340, 1.442695
        %v1360 = vpow.pop %v1359
        %v1361 = vmul.f32 %v1341, 1.442695
        %v1362 = vpow.pop %v1361
        %v1363 = vmul.f32 %v1342, 1.442695
        %v1364 = vpow.pop %v1363
        %v1365 = vmul.f32 %v1343, 1.442695
        %v1366 = vpow.pop %v1365
        %v1367 = vmul.f32 %v1344, 1.442695
        %v1368 = vpow.pop %v1367
        %v1369 = vmul.f32 %v1345, 1.442695
        %v1370 = vpow.pop %v1369
        %v1371 = vmul.f32 %v1346, 1.442695
        %v1372 = vpow.pop %v1371
        %v1373 = vmul.f32 %v1347, 1.442695
        %v1374 = vpow.pop %v1373
        %v1375 = vmul.f32 %v1348, 1.442695
        %v1376 = vpow.pop %v1375
        %v1377 = vmul.f32 %v1349, 1.442695
        %v1378 = vpow.pop %v1377
        %v1379 = vmul.f32 %v1350, 1.442695
        %v1380 = vpow.pop %v1379
        %v1381 = vmul.f32 %v1351, 1.442695
        %v1382 = vpow.pop %v1381
        %v1383 = vmul.f32 %v1352, 1.442695
        %v1384 = vpow.pop %v1383
        %1385 = vadd.xlane.f32.xlu0 %v1354
        %v1386 = vpop.xlane.xlu0 %1385
        %1387 = vadd.xlane.f32.xlu0 %v1356
        %v1388 = vpop.xlane.xlu0 %1387
        %1389 = vadd.xlane.f32.xlu0 %v1358
        %v1390 = vpop.xlane.xlu0 %1389
        %1391 = vadd.xlane.f32.xlu0 %v1360
        %v1392 = vpop.xlane.xlu0 %1391
        %1393 = vadd.xlane.f32.xlu0 %v1362
        %v1394 = vpop.xlane.xlu0 %1393
        %1395 = vadd.xlane.f32.xlu0 %v1364
        %v1396 = vpop.xlane.xlu0 %1395
        %1397 = vadd.xlane.f32.xlu0 %v1366
        %v1398 = vpop.xlane.xlu0 %1397
        %1399 = vadd.xlane.f32.xlu0 %v1368
        %v1400 = vpop.xlane.xlu0 %1399
        %1401 = vadd.xlane.f32.xlu0 %v1370
        %v1402 = vpop.xlane.xlu0 %1401
        %1403 = vadd.xlane.f32.xlu0 %v1372
        %v1404 = vpop.xlane.xlu0 %1403
        %1405 = vadd.xlane.f32.xlu0 %v1374
        %v1406 = vpop.xlane.xlu0 %1405
        %1407 = vadd.xlane.f32.xlu0 %v1376
        %v1408 = vpop.xlane.xlu0 %1407
        %1409 = vadd.xlane.f32.xlu0 %v1378
        %v1410 = vpop.xlane.xlu0 %1409
        %1411 = vadd.xlane.f32.xlu0 %v1380
        %v1412 = vpop.xlane.xlu0 %1411
        %1413 = vadd.xlane.f32.xlu0 %v1382
        %v1414 = vpop.xlane.xlu0 %1413
        %1415 = vadd.xlane.f32.xlu0 %v1384
        %v1416 = vpop.xlane.xlu0 %1415
        %v1417 = vlog2.pop %v1386
        %v1418 = vmul.f32 %v1417, 0.6931472
        %v1419 = vlog2.pop %v1388
        %v1420 = vmul.f32 %v1419, 0.6931472
        %v1421 = vlog2.pop %v1390
        %v1422 = vmul.f32 %v1421, 0.6931472
        %v1423 = vlog2.pop %v1392
        %v1424 = vmul.f32 %v1423, 0.6931472
        %v1425 = vlog2.pop %v1394
        %v1426 = vmul.f32 %v1425, 0.6931472
        %v1427 = vlog2.pop %v1396
        %v1428 = vmul.f32 %v1427, 0.6931472
        %v1429 = vlog2.pop %v1398
        %v1430 = vmul.f32 %v1429, 0.6931472
        %v1431 = vlog2.pop %v1400
        %v1432 = vmul.f32 %v1431, 0.6931472
        %v1433 = vlog2.pop %v1402
        %v1434 = vmul.f32 %v1433, 0.6931472
        %v1435 = vlog2.pop %v1404
        %v1436 = vmul.f32 %v1435, 0.6931472
        %v1437 = vlog2.pop %v1406
        %v1438 = vmul.f32 %v1437, 0.6931472
        %v1439 = vlog2.pop %v1408
        %v1440 = vmul.f32 %v1439, 0.6931472
        %v1441 = vlog2.pop %v1410
        %v1442 = vmul.f32 %v1441, 0.6931472
        %v1443 = vlog2.pop %v1412
        %v1444 = vmul.f32 %v1443, 0.6931472
        %v1445 = vlog2.pop %v1414
        %v1446 = vmul.f32 %v1445, 0.6931472
        %v1447 = vlog2.pop %v1416
        %v1448 = vmul.f32 %v1447, 0.6931472
        %v1449 = vsub.f32 %v1337, %v1418
        %v1450 = vsub.f32 %v1338, %v1420
        %v1451 = vsub.f32 %v1339, %v1422
        %v1452 = vsub.f32 %v1340, %v1424
        %v1453 = vsub.f32 %v1341, %v1426
        %v1454 = vsub.f32 %v1342, %v1428
        %v1455 = vsub.f32 %v1343, %v1430
        %v1456 = vsub.f32 %v1344, %v1432
        %v1457 = vsub.f32 %v1345, %v1434
        %v1458 = vsub.f32 %v1346, %v1436
        %v1459 = vsub.f32 %v1347, %v1438
        %v1460 = vsub.f32 %v1348, %v1440
        %v1461 = vsub.f32 %v1349, %v1442
        %v1462 = vsub.f32 %v1350, %v1444
        %v1463 = vsub.f32 %v1351, %v1446
        %v1464 = vsub.f32 %v1352, %v1448
        %1465 = vst [vmem:[%s218] sm:$0xff] %v1449
        %1466 = vst [vmem:[%s218 + $0x8] sm:$0xff] %v1450
        %1467 = vst [vmem:[%s218 + $0x10] sm:$0xff] %v1451
        %1468 = vst [vmem:[%s218 + $0x18] sm:$0xff] %v1452
        %1469 = vst [vmem:[%s218 + $0x20] sm:$0xff] %v1453
        %1470 = vst [vmem:[%s218 + $0x28] sm:$0xff] %v1454
        %1471 = vst [vmem:[%s218 + $0x30] sm:$0xff] %v1455
        %1472 = vst [vmem:[%s218 + $0x38] sm:$0xff] %v1456
        %1473 = vst [vmem:[%s218 + $0x40] sm:$0xff] %v1457
        %1474 = vst [vmem:[%s218 + $0x48] sm:$0xff] %v1458
        %1475 = vst [vmem:[%s218 + $0x50] sm:$0xff] %v1459
        %1476 = vst [vmem:[%s218 + $0x58] sm:$0xff] %v1460
        %1477 = vst [vmem:[%s218 + $0x60] sm:$0xff] %v1461
        %1478 = vst [vmem:[%s218 + $0x68] sm:$0xff] %v1462
        %1479 = vst [vmem:[%s218 + $0x70] sm:$0xff] %v1463
        %1480 = vst [vmem:[%s218 + $0x78] sm:$0xff] %v1464
        %s1481 = sand.u32 %s137, 1
        %s1482 = scalar_lea.sflag [#allocation3], %s1481
        %s1483 = sand.u32 %s137, 1
        %s1484 = smul.addr %s1483, 128
        %s1485 = scalar_lea.vmem [#allocation2], %s1484
        // Predicated region
        $region41: #{tpu_custom_call.1} parent=39 // pred_check
          %p1486 = pneg %p147
        $region42: #{tpu_custom_call.1} parent=39 // pred_check_branch
          %1488 = sbr.rel (%p1486) target = $region44
        $region43: #{tpu_custom_call.1} parent=39 // pred_region
          %s1489 = smul.u32 16, %s19
          %1491 = vsyncadd %s1482, 0
          %s1492 = smul.addr %s1489, 8
          %s1493 = scalar_lea.hbm %s5, %s1492
          %s1494 = sshll.u32 %s1485, 4
          %s1495 = int_to_ptr.vmem [resolvable:$true] %s1494
          %s1496 = sshll.u32 %s1493, 4
          %s1497 = int_to_ptr.hbm [resolvable:$true] %s1496
          %1502 = dma.vmem_to_hbm [thread:$0]  %s1495, 2048, %s1497, %s1482, 128, 128, 8
        $region44: #{tpu_custom_call.1} parent=39 // pred_fallthru
          _
      $region40: #{tpu_custom_call.1} parent=5 // pred_fallthru
        _
      %p1503 = scmp.le.s32.totalorder 2, %s14
      // Predicated region
      $region45: #{tpu_custom_call.1} parent=5 // pred_check
        %p1504 = pneg %p1503
      $region46: #{tpu_custom_call.1} parent=5 // pred_check_branch
        %1506 = sbr.rel (%p1504) target = $region48
      $region47: #{tpu_custom_call.1} parent=5 // pred_region
        %s1507 = ssub.s32 %s14, 2
        // Predicated region
        $region49: #{tpu_custom_call.1} parent=47 // pred_check
          %p1508 = pneg %p153
        $region50: #{tpu_custom_call.1} parent=47 // pred_check_branch
          %1510 = sbr.rel (%p1508) target = $region52
        $region51: #{tpu_custom_call.1} parent=47 // pred_region
          %s1511 = sand.u32 %s138, 1
          %s1512 = scalar_lea.sflag [#allocation3], %s1511
          %s1513 = sand.u32 %s138, 1
          %s1514 = smul.addr %s1513, 128
          %s1515 = scalar_lea.vmem [#allocation2], %s1514
          %1517 = dma.done %s1512, 2048
        $region52: #{tpu_custom_call.1} parent=47 // pred_fallthru
          _
      $region48: #{tpu_custom_call.1} parent=5 // pred_fallthru
        _
    $region6: #{tpu_custom_call.1} parent=1 // loop_footer
      %s18 = sadd.s32 1, %s14
    $region7: #{tpu_custom_call.1} parent=1 // loop_footer_branch
      %13 = sbr.rel target = $region3
    $region8: #{tpu_custom_call.1} parent=1 // loop_exit
      _
    %1518 = vsyncpa [#allocation3], 1
    %s1519 = scalar_lea.sflag [#allocation3], 1
    %1520 = vsyncpa %s1519, 1

</llo_original>
